<compile_context>
chip_gen: v7x
topology: tpu7x:2x2x1
jax: 0.10.0
libtpu: 0.0.40
codegen_flags: <defaults>
</compile_context>

<pallas_src>
import functools

import jax
import jax.numpy as jnp
from jax.experimental import pallas as pl
from jax.experimental.pallas import tpu as pltpu


# ---------------------------------------------------------------------------
# Fused kernel
# ---------------------------------------------------------------------------
def _deeponet_kernel(x_func_ref, x_loc_ref, out_bias_ref, *refs,
                     n_branch, n_trunk, activation):
    nb, nt = n_branch, n_trunk
    bw = refs[0:nb]                          # per layer: (D, K_l, N_l)
    bb = refs[nb:2 * nb]                     # per layer: (D, 1, N_l)
    tw = refs[2 * nb:2 * nb + nt]            # per layer: (K_l, N_l)
    tb = refs[2 * nb + nt:2 * nb + 2 * nt]   # per layer: (1, N_l)
    o_ref = refs[-1]                         # (D, U, T)

    if activation == "tanh":
        act = jnp.tanh                       # EUP op — off the VALU slots
    else:
        act = lambda v: jnp.maximum(v, 0.0)

    D = bw[0].shape[0]

    # ---- D branch heads, batched over the leading D axis: one matmul / layer
    x = x_func_ref[...]                                   # (U, K0)
    h = jnp.broadcast_to(x[None], (D,) + x.shape)         # (D, U, K0), hoisted
    for l in range(nb):
        h = jnp.einsum("duk,dkn->dun", h, bw[l][...],
                       preferred_element_type=jnp.float32) + bb[l][...]
        if l < nb - 1:
            h = act(h)
    # h: (D, U, p)

    # ---- trunk ----
    t = x_loc_ref[...]                                    # (T, K0t)
    for l in range(nt):
        t = jnp.dot(t, tw[l][...],
                    preferred_element_type=jnp.float32) + tb[l][...]
        if l < nt - 1:
            t = act(t)
    # DeepONet applies the trunk activation once more on the trunk output
    t = act(t)                                            # (T, p)

    # ---- combine: out[d,u,t] = sum_i h[d,u,i] * t[t,i] + bias[d] ----
    # Single dot_general, lowered as (D*U, p) @ (p, T); store lane dim is T.
    out = jnp.einsum("dui,ti->dut", h, t, preferred_element_type=jnp.float32)
    o_ref[...] = (out + out_bias_ref[...]).astype(o_ref.dtype)


def _whole_array_spec(a):
    nd = a.ndim
    return pl.BlockSpec(a.shape, lambda *_: (0,) * nd)


def deeponet_forward(branch_params_list, trunk_params, bias, x_func, x_loc,
                     activation="relu"):
    """Fused DeepONet forward.  Returns (U, T, dim_out) like the torch module."""
    D = len(branch_params_list)
    nb = len(branch_params_list[0])
    nt = len(trunk_params)
    U = x_func.shape[0]
    T = x_loc.shape[0]

    # Stack the D branch heads' per-layer params along a leading D axis.
    bw = [jnp.stack([branch_params_list[d][l][0] for d in range(D)], axis=0)
          for l in range(nb)]
    bb = [jnp.stack([branch_params_list[d][l][1] for d in range(D)], axis=0)[:, None, :]
          for l in range(nb)]
    tw = [w for (w, _) in trunk_params]
    tb = [b[None, :] for (_, b) in trunk_params]
    # Accepts bias of shape (D,) or torch-style (1, 1, D).
    out_bias = jnp.reshape(bias, (D, 1, 1)).astype(jnp.float32)

    operands = (x_func.astype(jnp.float32), x_loc.astype(jnp.float32),
                out_bias, *bw, *bb, *tw, *tb)

    out_dut = pl.pallas_call(
        functools.partial(_deeponet_kernel, n_branch=nb, n_trunk=nt,
                          activation=activation),
        out_shape=jax.ShapeDtypeStruct((D, U, T), jnp.float32),
        in_specs=[_whole_array_spec(a) for a in operands],
        out_specs=pl.BlockSpec((D, U, T), lambda *_: (0, 0, 0)),
        compiler_params=pltpu.CompilerParams(
            vmem_limit_bytes=32 * 1024 * 1024),  # below every generation's VMEM
    )(*operands)

    # Torch semantics: einsum('dui,ti->utd') -> (U, T, dim_out).  Transpose is
    # done outside the kernel so the kernel's stores keep lane = T.
    return jnp.transpose(out_dut, (1, 2, 0))


# ---------------------------------------------------------------------------
# Parameter init (mirrors torch: xavier_normal_ weights, zero bias).
# Weights stored (in, out) so the kernel computes x @ W + b.
# ---------------------------------------------------------------------------
def xavier_normal(key, fan_in, fan_out):
    std = (2.0 / (fan_in + fan_out)) ** 0.5
    return std * jax.random.normal(key, (fan_in, fan_out), jnp.float32)


def init_fnn(key, layer_sizes):
    params = []
    for i in range(1, len(layer_sizes)):
        key, sub = jax.random.split(key)
        w = xavier_normal(sub, layer_sizes[i - 1], layer_sizes[i])
        b = jnp.zeros((layer_sizes[i],), jnp.float32)
        params.append((w, b))
    return params, key


# ---------------------------------------------------------------------------
# Pure-JAX reference (for sanity check)
# ---------------------------------------------------------------------------
def fnn_ref(params, x):
    for (w, b) in params[:-1]:
        x = jnp.maximum(x @ w + b, 0.0)
    w, b = params[-1]
    return x @ w + b


def deeponet_ref(branch_params_list, trunk_params, bias, x_func, x_loc):
    branch_outs = jnp.stack([fnn_ref(bp, x_func) for bp in branch_params_list], 0)
    trunk_out = jnp.maximum(fnn_ref(trunk_params, x_loc), 0.0)
    out = jnp.einsum("dui,ti->utd", branch_outs, trunk_out)
    return out + bias.reshape(1, 1, -1)


# ---------------------------------------------------------------------------
if __name__ == "__main__":
    key = jax.random.PRNGKey(0)

    # Small shapes consistent with the module's forward.
    layer_sizes_branch = [16, 32, 32]   # branch_in=16, latent p=32
    layer_sizes_trunk = [8, 32, 32]     # trunk_in=8,  latent p=32
    dim_out = 2
    U, T = 4, 8                         # func batch, num query locations

    # Parameters
    branch_params_list = []
    for _ in range(dim_out):
        bp, key = init_fnn(key, layer_sizes_branch)
        branch_params_list.append(bp)
    trunk_params, key = init_fnn(key, layer_sizes_trunk)
    bias = jnp.zeros((dim_out,), jnp.float32)   # torch: zeros(1, 1, dim_out)

    # Inputs
    key, k1, k2 = jax.random.split(key, 3)
    x_func = jax.random.normal(k1, (U, layer_sizes_branch[0]), jnp.float32)
    x_loc = jax.random.normal(k2, (T, layer_sizes_trunk[0]), jnp.float32)

    fwd = jax.jit(deeponet_forward)
    out = jax.block_until_ready(
        fwd(branch_params_list, trunk_params, bias, x_func, x_loc))

    ref = deeponet_ref(branch_params_list, trunk_params, bias, x_func, x_loc)
    assert out.shape == (U, T, dim_out), out.shape
    assert jnp.allclose(out, ref, atol=1e-5, rtol=1e-5), "mismatch vs reference"

    print("KERNEL_OK")
</pallas_src>

<mosaic_0001>
module attributes {stable_mosaic.version = 11 : i64} {
  func.func @_deeponet_kernel(%arg0: memref<4x16xf32, #tpu.memory_space<vmem>>, %arg1: memref<8x8xf32, #tpu.memory_space<vmem>>, %arg2: memref<2x1x1xf32, #tpu.memory_space<vmem>>, %arg3: memref<2x16x32xf32, #tpu.memory_space<vmem>>, %arg4: memref<2x32x32xf32, #tpu.memory_space<vmem>>, %arg5: memref<2x1x32xf32, #tpu.memory_space<vmem>>, %arg6: memref<2x1x32xf32, #tpu.memory_space<vmem>>, %arg7: memref<8x32xf32, #tpu.memory_space<vmem>>, %arg8: memref<32x32xf32, #tpu.memory_space<vmem>>, %arg9: memref<1x32xf32, #tpu.memory_space<vmem>>, %arg10: memref<1x32xf32, #tpu.memory_space<vmem>>, %arg11: memref<2x4x8xf32, #tpu.memory_space<vmem>>) attributes {dimension_semantics = [], scalar_prefetch = 0 : i64, scratch_operands = 0 : i64, tpu.core_type = #tpu.core_type<tc>} {
    %c0 = arith.constant 0 : index
    %c0_0 = arith.constant 0 : index
    %0 = vector.load %arg0[%c0, %c0_0] : memref<4x16xf32, #tpu.memory_space<vmem>>, vector<4x16xf32>
    %1 = vector.shape_cast %0 : vector<4x16xf32> to vector<1x4x16xf32>
    %2 = vector.shape_cast %1 : vector<1x4x16xf32> to vector<1x4x16xf32>
    %3 = vector.broadcast %2 : vector<1x4x16xf32> to vector<2x4x16xf32>
    %c0_1 = arith.constant 0 : index
    %c0_2 = arith.constant 0 : index
    %c0_3 = arith.constant 0 : index
    %4 = vector.load %arg3[%c0_1, %c0_2, %c0_3] : memref<2x16x32xf32, #tpu.memory_space<vmem>>, vector<2x16x32xf32>
    "tpu.trace_start"() <{level = 10 : i32, message = "duk,dkn->dun"}> : () -> ()
    %cst = arith.constant dense<0.000000e+00> : vector<2x4x32xf32>
    %5 = tpu.matmul %3, %4, %cst {dimension_numbers = #tpu.dot_dimension_numbers<[2], [1], [1], [2], [0, 0, 0, 1, 1, 2], [0], [0]>} : vector<2x4x16xf32>, vector<2x16x32xf32>, vector<2x4x32xf32> -> vector<2x4x32xf32>
    "tpu.trace_stop"() : () -> ()
    %c0_4 = arith.constant 0 : index
    %c0_5 = arith.constant 0 : index
    %c0_6 = arith.constant 0 : index
    %6 = vector.load %arg5[%c0_4, %c0_5, %c0_6] : memref<2x1x32xf32, #tpu.memory_space<vmem>>, vector<2x1x32xf32>
    %7 = vector.broadcast %6 : vector<2x1x32xf32> to vector<2x4x32xf32>
    %8 = arith.addf %5, %7 : vector<2x4x32xf32>
    %cst_7 = arith.constant 0.000000e+00 : f32
    %9 = vector.broadcast %cst_7 : f32 to vector<2x4x32xf32>
    %10 = arith.maximumf %8, %9 : vector<2x4x32xf32>
    %c0_8 = arith.constant 0 : index
    %c0_9 = arith.constant 0 : index
    %c0_10 = arith.constant 0 : index
    %11 = vector.load %arg4[%c0_8, %c0_9, %c0_10] : memref<2x32x32xf32, #tpu.memory_space<vmem>>, vector<2x32x32xf32>
    "tpu.trace_start"() <{level = 10 : i32, message = "duk,dkn->dun"}> : () -> ()
    %cst_11 = arith.constant dense<0.000000e+00> : vector<2x4x32xf32>
    %12 = tpu.matmul %10, %11, %cst_11 {dimension_numbers = #tpu.dot_dimension_numbers<[2], [1], [1], [2], [0, 0, 0, 1, 1, 2], [0], [0]>} : vector<2x4x32xf32>, vector<2x32x32xf32>, vector<2x4x32xf32> -> vector<2x4x32xf32>
    "tpu.trace_stop"() : () -> ()
    %c0_12 = arith.constant 0 : index
    %c0_13 = arith.constant 0 : index
    %c0_14 = arith.constant 0 : index
    %13 = vector.load %arg6[%c0_12, %c0_13, %c0_14] : memref<2x1x32xf32, #tpu.memory_space<vmem>>, vector<2x1x32xf32>
    %14 = vector.broadcast %13 : vector<2x1x32xf32> to vector<2x4x32xf32>
    %15 = arith.addf %12, %14 : vector<2x4x32xf32>
    %c0_15 = arith.constant 0 : index
    %c0_16 = arith.constant 0 : index
    %16 = vector.load %arg1[%c0_15, %c0_16] : memref<8x8xf32, #tpu.memory_space<vmem>>, vector<8x8xf32>
    %c0_17 = arith.constant 0 : index
    %c0_18 = arith.constant 0 : index
    %17 = vector.load %arg7[%c0_17, %c0_18] : memref<8x32xf32, #tpu.memory_space<vmem>>, vector<8x32xf32>
    %cst_19 = arith.constant dense<0.000000e+00> : vector<8x32xf32>
    %18 = tpu.matmul %16, %17, %cst_19 {dimension_numbers = #tpu.dot_dimension_numbers<[1], [0], [0], [1], [0, 0, 1, 1], [], []>} : vector<8x8xf32>, vector<8x32xf32>, vector<8x32xf32> -> vector<8x32xf32>
    %c0_20 = arith.constant 0 : index
    %c0_21 = arith.constant 0 : index
    %19 = vector.load %arg9[%c0_20, %c0_21] : memref<1x32xf32, #tpu.memory_space<vmem>>, vector<1x32xf32>
    %20 = vector.broadcast %19 : vector<1x32xf32> to vector<8x32xf32>
    %21 = arith.addf %18, %20 : vector<8x32xf32>
    %cst_22 = arith.constant 0.000000e+00 : f32
    %22 = vector.broadcast %cst_22 : f32 to vector<8x32xf32>
    %23 = arith.maximumf %21, %22 : vector<8x32xf32>
    %c0_23 = arith.constant 0 : index
    %c0_24 = arith.constant 0 : index
    %24 = vector.load %arg8[%c0_23, %c0_24] : memref<32x32xf32, #tpu.memory_space<vmem>>, vector<32x32xf32>
    %cst_25 = arith.constant dense<0.000000e+00> : vector<8x32xf32>
    %25 = tpu.matmul %23, %24, %cst_25 {dimension_numbers = #tpu.dot_dimension_numbers<[1], [0], [0], [1], [0, 0, 1, 1], [], []>} : vector<8x32xf32>, vector<32x32xf32>, vector<8x32xf32> -> vector<8x32xf32>
    %c0_26 = arith.constant 0 : index
    %c0_27 = arith.constant 0 : index
    %26 = vector.load %arg10[%c0_26, %c0_27] : memref<1x32xf32, #tpu.memory_space<vmem>>, vector<1x32xf32>
    %27 = vector.broadcast %26 : vector<1x32xf32> to vector<8x32xf32>
    %28 = arith.addf %25, %27 : vector<8x32xf32>
    %cst_28 = arith.constant 0.000000e+00 : f32
    %29 = vector.broadcast %cst_28 : f32 to vector<8x32xf32>
    %30 = arith.maximumf %28, %29 : vector<8x32xf32>
    "tpu.trace_start"() <{level = 10 : i32, message = "dui,ti->dut"}> : () -> ()
    %cst_29 = arith.constant dense<0.000000e+00> : vector<2x4x8xf32>
    %31 = tpu.matmul %15, %30, %cst_29 {dimension_numbers = #tpu.dot_dimension_numbers<[2], [1], [0, 1], [0], [0, 0, 0, 1, 1, 0], [], []>} : vector<2x4x32xf32>, vector<8x32xf32>, vector<2x4x8xf32> -> vector<2x4x8xf32>
    "tpu.trace_stop"() : () -> ()
    %c0_30 = arith.constant 0 : index
    %c0_31 = arith.constant 0 : index
    %c0_32 = arith.constant 0 : index
    %32 = vector.load %arg2[%c0_30, %c0_31, %c0_32] : memref<2x1x1xf32, #tpu.memory_space<vmem>>, vector<2x1x1xf32>
    %33 = vector.broadcast %32 : vector<2x1x1xf32> to vector<2x4x8xf32>
    %34 = arith.addf %31, %33 : vector<2x4x8xf32>
    %c0_33 = arith.constant 0 : index
    %c0_34 = arith.constant 0 : index
    %c0_35 = arith.constant 0 : index
    %35 = vector.load %arg11[%c0_33, %c0_34, %c0_35] : memref<2x4x8xf32, #tpu.memory_space<vmem>>, vector<2x4x8xf32>
    tpu.vector_store %arg11[%c0_33, %c0_34, %c0_35], %34 {strides = array<i32>} : memref<2x4x8xf32, #tpu.memory_space<vmem>>, vector<2x4x8xf32>,
    return
  }
}

</mosaic_0001>

<llo_original>
// kernel: deeponet_forward.1
$region0: #{deeponet_forward.1}
  #allocation0 [shape = 'u32[]', space=smem, size = 0x4, offset = 0x4, fixed_abs, tag = 'smem constant byte address 0x4 - core index']
  #allocation1 [shape = 'u32[144,128]{1,0:T(1,128)}', space=vmem, size = 0x12000, scoped, tag = 'internal scratch']
  %s0 = inlined_call_operand.vmem [shape: f32[4,16], index: 0, kind: input, shape index: {}]
  %s1 = inlined_call_operand.vmem [shape: f32[8,8], index: 1, kind: input, shape index: {}]
  %s2 = inlined_call_operand.vmem [shape: f32[2,1,1], index: 2, kind: input, shape index: {}]
  %s3 = inlined_call_operand.vmem [shape: f32[2,16,32], index: 3, kind: input, shape index: {}]
  %s4 = inlined_call_operand.vmem [shape: f32[2,32,32], index: 4, kind: input, shape index: {}]
  %s5 = inlined_call_operand.vmem [shape: f32[2,1,32], index: 5, kind: input, shape index: {}]
  %s6 = inlined_call_operand.vmem [shape: f32[2,1,32], index: 6, kind: input, shape index: {}]
  %s7 = inlined_call_operand.vmem [shape: f32[8,32], index: 7, kind: input, shape index: {}]
  %s8 = inlined_call_operand.vmem [shape: f32[32,32], index: 8, kind: input, shape index: {}]
  %s9 = inlined_call_operand.vmem [shape: f32[1,32], index: 9, kind: input, shape index: {}]
  %s10 = inlined_call_operand.vmem [shape: f32[1,32], index: 10, kind: input, shape index: {}]
  %s11 = inlined_call_operand.vmem [shape: f32[2,4,8], index: 11, kind: output, shape index: {}]
  %s12 = sld [smem:[#allocation0]]
  $region54: #{deeponet_forward.1} parent=0
    _
  %s14 = ssub.s32 1, %s12
  %s15 = scalar_select 0, %s14, %s12
  // Predicated region
  $region2: #{deeponet_forward.1} parent=0 // pred_check
    _
  $region3: #{deeponet_forward.1} parent=0 // pred_check_branch
    %17 = sbr.rel (0) target = $region5
  $region4: #{deeponet_forward.1} parent=0 // pred_region
    _
  $region5: #{deeponet_forward.1} parent=0 // pred_fallthru
    _
  // Predicated region
  $region6: #{deeponet_forward.1} parent=0 // pred_check
    _
  $region7: #{deeponet_forward.1} parent=0 // pred_check_branch
    %19 = sbr.rel (0) target = $region9
  $region8: #{deeponet_forward.1} parent=0 // pred_region
    _
  $region9: #{deeponet_forward.1} parent=0 // pred_fallthru
    _
  // Predicated region
  $region10: #{deeponet_forward.1} parent=0 // pred_check
    _
  $region11: #{deeponet_forward.1} parent=0 // pred_check_branch
    %21 = sbr.rel (0) target = $region13
  $region12: #{deeponet_forward.1} parent=0 // pred_region
    _
  $region13: #{deeponet_forward.1} parent=0 // pred_fallthru
    _
  // Predicated region
  $region14: #{deeponet_forward.1} parent=0 // pred_check
    _
  $region15: #{deeponet_forward.1} parent=0 // pred_check_branch
    %23 = sbr.rel (0) target = $region17
  $region16: #{deeponet_forward.1} parent=0 // pred_region
    _
  $region17: #{deeponet_forward.1} parent=0 // pred_fallthru
    _
  // Predicated region
  $region18: #{deeponet_forward.1} parent=0 // pred_check
    _
  $region19: #{deeponet_forward.1} parent=0 // pred_check_branch
    %25 = sbr.rel (0) target = $region21
  $region20: #{deeponet_forward.1} parent=0 // pred_region
    _
  $region21: #{deeponet_forward.1} parent=0 // pred_fallthru
    _
  // Predicated region
  $region22: #{deeponet_forward.1} parent=0 // pred_check
    _
  $region23: #{deeponet_forward.1} parent=0 // pred_check_branch
    %27 = sbr.rel (0) target = $region25
  $region24: #{deeponet_forward.1} parent=0 // pred_region
    _
  $region25: #{deeponet_forward.1} parent=0 // pred_fallthru
    _
  // Predicated region
  $region26: #{deeponet_forward.1} parent=0 // pred_check
    _
  $region27: #{deeponet_forward.1} parent=0 // pred_check_branch
    %29 = sbr.rel (0) target = $region29
  $region28: #{deeponet_forward.1} parent=0 // pred_region
    _
  $region29: #{deeponet_forward.1} parent=0 // pred_fallthru
    _
  // Predicated region
  $region30: #{deeponet_forward.1} parent=0 // pred_check
    _
  $region31: #{deeponet_forward.1} parent=0 // pred_check_branch
    %31 = sbr.rel (0) target = $region33
  $region32: #{deeponet_forward.1} parent=0 // pred_region
    _
  $region33: #{deeponet_forward.1} parent=0 // pred_fallthru
    _
  // Predicated region
  $region34: #{deeponet_forward.1} parent=0 // pred_check
    _
  $region35: #{deeponet_forward.1} parent=0 // pred_check_branch
    %33 = sbr.rel (0) target = $region37
  $region36: #{deeponet_forward.1} parent=0 // pred_region
    _
  $region37: #{deeponet_forward.1} parent=0 // pred_fallthru
    _
  // Predicated region
  $region38: #{deeponet_forward.1} parent=0 // pred_check
    _
  $region39: #{deeponet_forward.1} parent=0 // pred_check_branch
    %35 = sbr.rel (0) target = $region41
  $region40: #{deeponet_forward.1} parent=0 // pred_region
    _
  $region41: #{deeponet_forward.1} parent=0 // pred_fallthru
    _
  // Predicated region
  $region42: #{deeponet_forward.1} parent=0 // pred_check
    _
  $region43: #{deeponet_forward.1} parent=0 // pred_check_branch
    %37 = sbr.rel (0) target = $region45
  $region44: #{deeponet_forward.1} parent=0 // pred_region
    _
  $region45: #{deeponet_forward.1} parent=0 // pred_fallthru
    _
  %v38 = vld [vmem:[%s0] sm:$0xf]
  %v39 = vld [vmem:[%s3] sm:$0xff]
  %v40 = vld [vmem:[%s3 + $0x8] sm:$0xff]
  %v41 = vld [vmem:[%s3 + $0x10] sm:$0xff]
  %v42 = vld [vmem:[%s3 + $0x18] sm:$0xff]
  %v43 = vld [vmem:[%s5] sm:$0x1]
  %v44 = vld [vmem:[%s5 + $0x1] sm:$0x1]
  %v47 = vlaneseq
  %v48 = vshrl.u32 %v47, 7
  %v49 = vsub.s32 0, %v48
  %v50 = vrot.slane %v43, %v49
  %v51 = vlaneseq
  %v52 = vshrl.u32 %v51, 7
  %v53 = vsub.s32 0, %v52
  %v54 = vrot.slane %v44, %v53
  %vm57 = vcmask 130048
  %v59 = vsel %vm57, %v38, 0
  %61 = vmatprep.subr.mxu0 0.0
  %62 = vmatpush1.msra.mxu0 %v39
  %63 = vmatprep.subr.mxu0 0.0
  %64 = vmatpush1.msra.mxu0 %v40
  %65 = vmatprep.subr.mxu0 0.0
  %66 = vmatpush1.msra.mxu0 0.0
  %67 = vmatprep.subr.mxu0 0.0
  %68 = vmatpush1.msra.mxu0 0.0
  %69 = vmatprep.subr.mxu0 0.0
  %70 = vmatpush1.msra.mxu0 0.0
  %71 = vmatprep.subr.mxu0 0.0
  %72 = vmatpush1.msra.mxu0 0.0
  %73 = vmatprep.subr.mxu0 0.0
  %74 = vmatpush1.msra.mxu0 0.0
  %75 = vmatprep.subr.mxu0 0.0
  %76 = vmatpush1.msra.mxu0 0.0
  %77 = vmatprep.subr.mxu0 0.0
  %78 = vmatpush1.msra.mxu0 0.0
  %79 = vmatprep.subr.mxu0 0.0
  %80 = vmatpush1.msra.mxu0 0.0
  %81 = vmatprep.subr.mxu0 0.0
  %82 = vmatpush1.msra.mxu0 0.0
  %83 = vmatprep.subr.mxu0 0.0
  %84 = vmatpush1.msra.mxu0 0.0
  %85 = vmatprep.subr.mxu0 0.0
  %86 = vmatpush1.msra.mxu0 0.0
  %87 = vmatprep.subr.mxu0 0.0
  %88 = vmatpush1.msra.mxu0 0.0
  %89 = vmatprep.subr.mxu0 0.0
  %90 = vmatpush1.msra.mxu0 0.0
  %91 = vmatprep.subr.mxu0 0.0
  %92 = vmatpush1.msra.mxu0 0.0
  %93 = vmatprep.subr.mxu0 0.0
  %94 = vmatpush1.msra.mxu0 0.0
  %95 = vmatprep.subr.mxu0 0.0
  %96 = vmatpush1.msra.mxu0 0.0
  %97 = vmatprep.subr.mxu0 0.0
  %98 = vmatpush1.msra.mxu0 0.0
  %99 = vmatprep.subr.mxu0 0.0
  %100 = vmatpush1.msra.mxu0 0.0
  %101 = vmatprep.subr.mxu0 0.0
  %102 = vmatpush1.msra.mxu0 0.0
  %103 = vmatprep.subr.mxu0 0.0
  %104 = vmatpush1.msra.mxu0 0.0
  %105 = vmatprep.subr.mxu0 0.0
  %106 = vmatpush1.msra.mxu0 0.0
  %107 = vmatprep.subr.mxu0 0.0
  %108 = vmatpush1.msra.mxu0 0.0
  %109 = vmatprep.subr.mxu0 0.0
  %110 = vmatpush1.msra.mxu0 0.0
  %111 = vmatprep.subr.mxu0 0.0
  %112 = vmatpush1.msra.mxu0 0.0
  %113 = vmatprep.subr.mxu0 0.0
  %114 = vmatpush1.msra.mxu0 0.0
  %115 = vmatprep.subr.mxu0 0.0
  %116 = vmatpush1.msra.mxu0 0.0
  %117 = vmatprep.subr.mxu0 0.0
  %118 = vmatpush1.msra.mxu0 0.0
  %119 = vmatprep.subr.mxu0 0.0
  %120 = vmatpush1.msra.mxu0 0.0
  %121 = vmatprep.subr.mxu0 0.0
  %122 = vmatpush1.msra.mxu0 0.0
  %123 = vmatprep.subr.mxu0 0.0
  %124 = vmatpush1.msra.mxu0 0.0
  %125 = vmatprep.mubr.f32.mxu0 0.0
  %126 = vmatmul.mubr.f32.gmra.mrb[0].mxu0 %v59
  %v127 = vpop.f32.mrb[0].mxu0
  %v128 = vadd.f32 %v50, %v127
  %v129 = vpop.f32.mrb[0].mxu0
  %130 = vdwg.mxu0
  %131 = vmatprep.subr.mxu0 0.0
  %132 = vmatpush1.msra.mxu0 %v41
  %133 = vmatprep.subr.mxu0 0.0
  %134 = vmatpush1.msra.mxu0 %v42
  %135 = vmatprep.subr.mxu0 0.0
  %136 = vmatpush1.msra.mxu0 0.0
  %137 = vmatprep.subr.mxu0 0.0
  %138 = vmatpush1.msra.mxu0 0.0
  %139 = vmatprep.subr.mxu0 0.0
  %140 = vmatpush1.msra.mxu0 0.0
  %141 = vmatprep.subr.mxu0 0.0
  %142 = vmatpush1.msra.mxu0 0.0
  %143 = vmatprep.subr.mxu0 0.0
  %144 = vmatpush1.msra.mxu0 0.0
  %145 = vmatprep.subr.mxu0 0.0
  %146 = vmatpush1.msra.mxu0 0.0
  %147 = vmatprep.subr.mxu0 0.0
  %148 = vmatpush1.msra.mxu0 0.0
  %149 = vmatprep.subr.mxu0 0.0
  %150 = vmatpush1.msra.mxu0 0.0
  %151 = vmatprep.subr.mxu0 0.0
  %152 = vmatpush1.msra.mxu0 0.0
  %153 = vmatprep.subr.mxu0 0.0
  %154 = vmatpush1.msra.mxu0 0.0
  %155 = vmatprep.subr.mxu0 0.0
  %156 = vmatpush1.msra.mxu0 0.0
  %157 = vmatprep.subr.mxu0 0.0
  %158 = vmatpush1.msra.mxu0 0.0
  %159 = vmatprep.subr.mxu0 0.0
  %160 = vmatpush1.msra.mxu0 0.0
  %161 = vmatprep.subr.mxu0 0.0
  %162 = vmatpush1.msra.mxu0 0.0
  %163 = vmatprep.subr.mxu0 0.0
  %164 = vmatpush1.msra.mxu0 0.0
  %165 = vmatprep.subr.mxu0 0.0
  %166 = vmatpush1.msra.mxu0 0.0
  %167 = vmatprep.subr.mxu0 0.0
  %168 = vmatpush1.msra.mxu0 0.0
  %169 = vmatprep.subr.mxu0 0.0
  %170 = vmatpush1.msra.mxu0 0.0
  %171 = vmatprep.subr.mxu0 0.0
  %172 = vmatpush1.msra.mxu0 0.0
  %173 = vmatprep.subr.mxu0 0.0
  %174 = vmatpush1.msra.mxu0 0.0
  %175 = vmatprep.subr.mxu0 0.0
  %176 = vmatpush1.msra.mxu0 0.0
  %177 = vmatprep.subr.mxu0 0.0
  %178 = vmatpush1.msra.mxu0 0.0
  %179 = vmatprep.subr.mxu0 0.0
  %180 = vmatpush1.msra.mxu0 0.0
  %181 = vmatprep.subr.mxu0 0.0
  %182 = vmatpush1.msra.mxu0 0.0
  %183 = vmatprep.subr.mxu0 0.0
  %184 = vmatpush1.msra.mxu0 0.0
  %185 = vmatprep.subr.mxu0 0.0
  %186 = vmatpush1.msra.mxu0 0.0
  %187 = vmatprep.subr.mxu0 0.0
  %188 = vmatpush1.msra.mxu0 0.0
  %189 = vmatprep.subr.mxu0 0.0
  %190 = vmatpush1.msra.mxu0 0.0
  %191 = vmatprep.subr.mxu0 0.0
  %192 = vmatpush1.msra.mxu0 0.0
  %193 = vmatprep.subr.mxu0 0.0
  %194 = vmatpush1.msra.mxu0 0.0
  %195 = vmatprep.mubr.f32.mxu0 0.0
  %196 = vmatmul.mubr.f32.gmra.mrb[0].mxu0 %v59
  %v197 = vpop.f32.mrb[0].mxu0
  %v198 = vadd.f32 %v54, %v197
  %v199 = vpop.f32.mrb[0].mxu0
  %200 = vdwg.mxu0
  %v201 = vmax.f32 %v128, 0.0
  %v202 = vmax.f32 %v198, 0.0
  %v203 = vld [vmem:[%s4] sm:$0xff]
  %v204 = vld [vmem:[%s4 + $0x8] sm:$0xff]
  %v205 = vld [vmem:[%s4 + $0x10] sm:$0xff]
  %v206 = vld [vmem:[%s4 + $0x18] sm:$0xff]
  %v207 = vld [vmem:[%s4 + $0x20] sm:$0xff]
  %v208 = vld [vmem:[%s4 + $0x28] sm:$0xff]
  %v209 = vld [vmem:[%s4 + $0x30] sm:$0xff]
  %v210 = vld [vmem:[%s4 + $0x38] sm:$0xff]
  %v211 = vld [vmem:[%s6] sm:$0x1]
  %v212 = vld [vmem:[%s6 + $0x1] sm:$0x1]
  %v215 = vlaneseq
  %v216 = vshrl.u32 %v215, 7
  %v217 = vsub.s32 0, %v216
  %v218 = vrot.slane %v211, %v217
  %v219 = vlaneseq
  %v220 = vshrl.u32 %v219, 7
  %v221 = vsub.s32 0, %v220
  %v222 = vrot.slane %v212, %v221
  %vm225 = vcmask 261120
  %v227 = vsel %vm225, %v201, 0
  %229 = vmatprep.subr.mxu0 0.0
  %230 = vmatpush1.msra.mxu0 %v203
  %231 = vmatprep.subr.mxu0 0.0
  %232 = vmatpush1.msra.mxu0 %v204
  %233 = vmatprep.subr.mxu0 0.0
  %234 = vmatpush1.msra.mxu0 %v205
  %235 = vmatprep.subr.mxu0 0.0
  %236 = vmatpush1.msra.mxu0 %v206
  %237 = vmatprep.subr.mxu0 0.0
  %238 = vmatpush1.msra.mxu0 0.0
  %239 = vmatprep.subr.mxu0 0.0
  %240 = vmatpush1.msra.mxu0 0.0
  %241 = vmatprep.subr.mxu0 0.0
  %242 = vmatpush1.msra.mxu0 0.0
  %243 = vmatprep.subr.mxu0 0.0
  %244 = vmatpush1.msra.mxu0 0.0
  %245 = vmatprep.subr.mxu0 0.0
  %246 = vmatpush1.msra.mxu0 0.0
  %247 = vmatprep.subr.mxu0 0.0
  %248 = vmatpush1.msra.mxu0 0.0
  %249 = vmatprep.subr.mxu0 0.0
  %250 = vmatpush1.msra.mxu0 0.0
  %251 = vmatprep.subr.mxu0 0.0
  %252 = vmatpush1.msra.mxu0 0.0
  %253 = vmatprep.subr.mxu0 0.0
  %254 = vmatpush1.msra.mxu0 0.0
  %255 = vmatprep.subr.mxu0 0.0
  %256 = vmatpush1.msra.mxu0 0.0
  %257 = vmatprep.subr.mxu0 0.0
  %258 = vmatpush1.msra.mxu0 0.0
  %259 = vmatprep.subr.mxu0 0.0
  %260 = vmatpush1.msra.mxu0 0.0
  %261 = vmatprep.subr.mxu0 0.0
  %262 = vmatpush1.msra.mxu0 0.0
  %263 = vmatprep.subr.mxu0 0.0
  %264 = vmatpush1.msra.mxu0 0.0
  %265 = vmatprep.subr.mxu0 0.0
  %266 = vmatpush1.msra.mxu0 0.0
  %267 = vmatprep.subr.mxu0 0.0
  %268 = vmatpush1.msra.mxu0 0.0
  %269 = vmatprep.subr.mxu0 0.0
  %270 = vmatpush1.msra.mxu0 0.0
  %271 = vmatprep.subr.mxu0 0.0
  %272 = vmatpush1.msra.mxu0 0.0
  %273 = vmatprep.subr.mxu0 0.0
  %274 = vmatpush1.msra.mxu0 0.0
  %275 = vmatprep.subr.mxu0 0.0
  %276 = vmatpush1.msra.mxu0 0.0
  %277 = vmatprep.subr.mxu0 0.0
  %278 = vmatpush1.msra.mxu0 0.0
  %279 = vmatprep.subr.mxu0 0.0
  %280 = vmatpush1.msra.mxu0 0.0
  %281 = vmatprep.subr.mxu0 0.0
  %282 = vmatpush1.msra.mxu0 0.0
  %283 = vmatprep.subr.mxu0 0.0
  %284 = vmatpush1.msra.mxu0 0.0
  %285 = vmatprep.subr.mxu0 0.0
  %286 = vmatpush1.msra.mxu0 0.0
  %287 = vmatprep.subr.mxu0 0.0
  %288 = vmatpush1.msra.mxu0 0.0
  %289 = vmatprep.subr.mxu0 0.0
  %290 = vmatpush1.msra.mxu0 0.0
  %291 = vmatprep.subr.mxu0 0.0
  %292 = vmatpush1.msra.mxu0 0.0
  %293 = vmatprep.mubr.f32.mxu0 0.0
  %294 = vmatmul.mubr.f32.gmra.mrb[0].mxu0 %v227
  %v295 = vpop.f32.mrb[0].mxu0
  %v296 = vadd.f32 %v218, %v295
  %v297 = vpop.f32.mrb[0].mxu0
  %298 = vdwg.mxu0
  %v300 = vsel %vm225, %v202, 0
  %302 = vmatprep.subr.mxu0 0.0
  %303 = vmatpush1.msra.mxu0 %v207
  %304 = vmatprep.subr.mxu0 0.0
  %305 = vmatpush1.msra.mxu0 %v208
  %306 = vmatprep.subr.mxu0 0.0
  %307 = vmatpush1.msra.mxu0 %v209
  %308 = vmatprep.subr.mxu0 0.0
  %309 = vmatpush1.msra.mxu0 %v210
  %310 = vmatprep.subr.mxu0 0.0
  %311 = vmatpush1.msra.mxu0 0.0
  %312 = vmatprep.subr.mxu0 0.0
  %313 = vmatpush1.msra.mxu0 0.0
  %314 = vmatprep.subr.mxu0 0.0
  %315 = vmatpush1.msra.mxu0 0.0
  %316 = vmatprep.subr.mxu0 0.0
  %317 = vmatpush1.msra.mxu0 0.0
  %318 = vmatprep.subr.mxu0 0.0
  %319 = vmatpush1.msra.mxu0 0.0
  %320 = vmatprep.subr.mxu0 0.0
  %321 = vmatpush1.msra.mxu0 0.0
  %322 = vmatprep.subr.mxu0 0.0
  %323 = vmatpush1.msra.mxu0 0.0
  %324 = vmatprep.subr.mxu0 0.0
  %325 = vmatpush1.msra.mxu0 0.0
  %326 = vmatprep.subr.mxu0 0.0
  %327 = vmatpush1.msra.mxu0 0.0
  %328 = vmatprep.subr.mxu0 0.0
  %329 = vmatpush1.msra.mxu0 0.0
  %330 = vmatprep.subr.mxu0 0.0
  %331 = vmatpush1.msra.mxu0 0.0
  %332 = vmatprep.subr.mxu0 0.0
  %333 = vmatpush1.msra.mxu0 0.0
  %334 = vmatprep.subr.mxu0 0.0
  %335 = vmatpush1.msra.mxu0 0.0
  %336 = vmatprep.subr.mxu0 0.0
  %337 = vmatpush1.msra.mxu0 0.0
  %338 = vmatprep.subr.mxu0 0.0
  %339 = vmatpush1.msra.mxu0 0.0
  %340 = vmatprep.subr.mxu0 0.0
  %341 = vmatpush1.msra.mxu0 0.0
  %342 = vmatprep.subr.mxu0 0.0
  %343 = vmatpush1.msra.mxu0 0.0
  %344 = vmatprep.subr.mxu0 0.0
  %345 = vmatpush1.msra.mxu0 0.0
  %346 = vmatprep.subr.mxu0 0.0
  %347 = vmatpush1.msra.mxu0 0.0
  %348 = vmatprep.subr.mxu0 0.0
  %349 = vmatpush1.msra.mxu0 0.0
  %350 = vmatprep.subr.mxu0 0.0
  %351 = vmatpush1.msra.mxu0 0.0
  %352 = vmatprep.subr.mxu0 0.0
  %353 = vmatpush1.msra.mxu0 0.0
  %354 = vmatprep.subr.mxu0 0.0
  %355 = vmatpush1.msra.mxu0 0.0
  %356 = vmatprep.subr.mxu0 0.0
  %357 = vmatpush1.msra.mxu0 0.0
  %358 = vmatprep.subr.mxu0 0.0
  %359 = vmatpush1.msra.mxu0 0.0
  %360 = vmatprep.subr.mxu0 0.0
  %361 = vmatpush1.msra.mxu0 0.0
  %362 = vmatprep.subr.mxu0 0.0
  %363 = vmatpush1.msra.mxu0 0.0
  %364 = vmatprep.subr.mxu0 0.0
  %365 = vmatpush1.msra.mxu0 0.0
  %366 = vmatprep.mubr.f32.mxu0 0.0
  %367 = vmatmul.mubr.f32.gmra.mrb[0].mxu0 %v300
  %v368 = vpop.f32.mrb[0].mxu0
  %v369 = vadd.f32 %v222, %v368
  %v370 = vpop.f32.mrb[0].mxu0
  %371 = vdwg.mxu0
  %v372 = vld [vmem:[%s1] sm:$0xff]
  %v373 = vld [vmem:[%s7] sm:$0xff]
  %v374 = vld [vmem:[%s9] sm:$0x1]
  %v376 = vlaneseq
  %v377 = vshrl.u32 %v376, 7
  %v378 = vsub.s32 0, %v377
  %v379 = vrot.slane %v374, %v378
  %vm381 = vcmask 64512
  %v383 = vsel %vm381, %v372, 0
  %385 = vmatprep.subr.mxu0 0.0
  %386 = vmatpush1.msra.mxu0 %v373
  %387 = vmatprep.subr.mxu0 0.0
  %388 = vmatpush1.msra.mxu0 0.0
  %389 = vmatprep.subr.mxu0 0.0
  %390 = vmatpush1.msra.mxu0 0.0
  %391 = vmatprep.subr.mxu0 0.0
  %392 = vmatpush1.msra.mxu0 0.0
  %393 = vmatprep.subr.mxu0 0.0
  %394 = vmatpush1.msra.mxu0 0.0
  %395 = vmatprep.subr.mxu0 0.0
  %396 = vmatpush1.msra.mxu0 0.0
  %397 = vmatprep.subr.mxu0 0.0
  %398 = vmatpush1.msra.mxu0 0.0
  %399 = vmatprep.subr.mxu0 0.0
  %400 = vmatpush1.msra.mxu0 0.0
  %401 = vmatprep.subr.mxu0 0.0
  %402 = vmatpush1.msra.mxu0 0.0
  %403 = vmatprep.subr.mxu0 0.0
  %404 = vmatpush1.msra.mxu0 0.0
  %405 = vmatprep.subr.mxu0 0.0
  %406 = vmatpush1.msra.mxu0 0.0
  %407 = vmatprep.subr.mxu0 0.0
  %408 = vmatpush1.msra.mxu0 0.0
  %409 = vmatprep.subr.mxu0 0.0
  %410 = vmatpush1.msra.mxu0 0.0
  %411 = vmatprep.subr.mxu0 0.0
  %412 = vmatpush1.msra.mxu0 0.0
  %413 = vmatprep.subr.mxu0 0.0
  %414 = vmatpush1.msra.mxu0 0.0
  %415 = vmatprep.subr.mxu0 0.0
  %416 = vmatpush1.msra.mxu0 0.0
  %417 = vmatprep.subr.mxu0 0.0
  %418 = vmatpush1.msra.mxu0 0.0
  %419 = vmatprep.subr.mxu0 0.0
  %420 = vmatpush1.msra.mxu0 0.0
  %421 = vmatprep.subr.mxu0 0.0
  %422 = vmatpush1.msra.mxu0 0.0
  %423 = vmatprep.subr.mxu0 0.0
  %424 = vmatpush1.msra.mxu0 0.0
  %425 = vmatprep.subr.mxu0 0.0
  %426 = vmatpush1.msra.mxu0 0.0
  %427 = vmatprep.subr.mxu0 0.0
  %428 = vmatpush1.msra.mxu0 0.0
  %429 = vmatprep.subr.mxu0 0.0
  %430 = vmatpush1.msra.mxu0 0.0
  %431 = vmatprep.subr.mxu0 0.0
  %432 = vmatpush1.msra.mxu0 0.0
  %433 = vmatprep.subr.mxu0 0.0
  %434 = vmatpush1.msra.mxu0 0.0
  %435 = vmatprep.subr.mxu0 0.0
  %436 = vmatpush1.msra.mxu0 0.0
  %437 = vmatprep.subr.mxu0 0.0
  %438 = vmatpush1.msra.mxu0 0.0
  %439 = vmatprep.subr.mxu0 0.0
  %440 = vmatpush1.msra.mxu0 0.0
  %441 = vmatprep.subr.mxu0 0.0
  %442 = vmatpush1.msra.mxu0 0.0
  %443 = vmatprep.subr.mxu0 0.0
  %444 = vmatpush1.msra.mxu0 0.0
  %445 = vmatprep.subr.mxu0 0.0
  %446 = vmatpush1.msra.mxu0 0.0
  %447 = vmatprep.subr.mxu0 0.0
  %448 = vmatpush1.msra.mxu0 0.0
  %449 = vmatprep.mubr.f32.mxu0 0.0
  %450 = vmatmul.mubr.f32.gmra.mrb[0].mxu0 %v383
  %v451 = vpop.f32.mrb[0].mxu0
  %v452 = vadd.f32 %v379, %v451
  %v453 = vpop.f32.mrb[0].mxu0
  %454 = vdwg.mxu0
  %v455 = vmax.f32 %v452, 0.0
  %v456 = vld [vmem:[%s8] sm:$0xff]
  %v457 = vld [vmem:[%s8 + $0x8] sm:$0xff]
  %v458 = vld [vmem:[%s8 + $0x10] sm:$0xff]
  %v459 = vld [vmem:[%s8 + $0x18] sm:$0xff]
  %v460 = vld [vmem:[%s10] sm:$0x1]
  %v462 = vlaneseq
  %v463 = vshrl.u32 %v462, 7
  %v464 = vsub.s32 0, %v463
  %v465 = vrot.slane %v460, %v464
  %v468 = vsel %vm225, %v455, 0
  %470 = vmatprep.subr.mxu0 0.0
  %471 = vmatpush1.msra.mxu0 %v456
  %472 = vmatprep.subr.mxu0 0.0
  %473 = vmatpush1.msra.mxu0 %v457
  %474 = vmatprep.subr.mxu0 0.0
  %475 = vmatpush1.msra.mxu0 %v458
  %476 = vmatprep.subr.mxu0 0.0
  %477 = vmatpush1.msra.mxu0 %v459
  %478 = vmatprep.subr.mxu0 0.0
  %479 = vmatpush1.msra.mxu0 0.0
  %480 = vmatprep.subr.mxu0 0.0
  %481 = vmatpush1.msra.mxu0 0.0
  %482 = vmatprep.subr.mxu0 0.0
  %483 = vmatpush1.msra.mxu0 0.0
  %484 = vmatprep.subr.mxu0 0.0
  %485 = vmatpush1.msra.mxu0 0.0
  %486 = vmatprep.subr.mxu0 0.0
  %487 = vmatpush1.msra.mxu0 0.0
  %488 = vmatprep.subr.mxu0 0.0
  %489 = vmatpush1.msra.mxu0 0.0
  %490 = vmatprep.subr.mxu0 0.0
  %491 = vmatpush1.msra.mxu0 0.0
  %492 = vmatprep.subr.mxu0 0.0
  %493 = vmatpush1.msra.mxu0 0.0
  %494 = vmatprep.subr.mxu0 0.0
  %495 = vmatpush1.msra.mxu0 0.0
  %496 = vmatprep.subr.mxu0 0.0
  %497 = vmatpush1.msra.mxu0 0.0
  %498 = vmatprep.subr.mxu0 0.0
  %499 = vmatpush1.msra.mxu0 0.0
  %500 = vmatprep.subr.mxu0 0.0
  %501 = vmatpush1.msra.mxu0 0.0
  %502 = vmatprep.subr.mxu0 0.0
  %503 = vmatpush1.msra.mxu0 0.0
  %504 = vmatprep.subr.mxu0 0.0
  %505 = vmatpush1.msra.mxu0 0.0
  %506 = vmatprep.subr.mxu0 0.0
  %507 = vmatpush1.msra.mxu0 0.0
  %508 = vmatprep.subr.mxu0 0.0
  %509 = vmatpush1.msra.mxu0 0.0
  %510 = vmatprep.subr.mxu0 0.0
  %511 = vmatpush1.msra.mxu0 0.0
  %512 = vmatprep.subr.mxu0 0.0
  %513 = vmatpush1.msra.mxu0 0.0
  %514 = vmatprep.subr.mxu0 0.0
  %515 = vmatpush1.msra.mxu0 0.0
  %516 = vmatprep.subr.mxu0 0.0
  %517 = vmatpush1.msra.mxu0 0.0
  %518 = vmatprep.subr.mxu0 0.0
  %519 = vmatpush1.msra.mxu0 0.0
  %520 = vmatprep.subr.mxu0 0.0
  %521 = vmatpush1.msra.mxu0 0.0
  %522 = vmatprep.subr.mxu0 0.0
  %523 = vmatpush1.msra.mxu0 0.0
  %524 = vmatprep.subr.mxu0 0.0
  %525 = vmatpush1.msra.mxu0 0.0
  %526 = vmatprep.subr.mxu0 0.0
  %527 = vmatpush1.msra.mxu0 0.0
  %528 = vmatprep.subr.mxu0 0.0
  %529 = vmatpush1.msra.mxu0 0.0
  %530 = vmatprep.subr.mxu0 0.0
  %531 = vmatpush1.msra.mxu0 0.0
  %532 = vmatprep.subr.mxu0 0.0
  %533 = vmatpush1.msra.mxu0 0.0
  %534 = vmatprep.mubr.f32.mxu0 0.0
  %535 = vmatmul.mubr.f32.gmra.mrb[0].mxu0 %v468
  %v536 = vpop.f32.mrb[0].mxu0
  %v537 = vadd.f32 %v465, %v536
  %v538 = vpop.f32.mrb[0].mxu0
  %539 = vdwg.mxu0
  %v540 = vmax.f32 %v537, 0.0
  %v541 = vld [vmem:[%s2] sm:$0x1]
  %v542 = vld [vmem:[%s2 + $0x1] sm:$0x1]
  %v545 = vlaneseq
  %v546 = vshrl.u32 %v545, 7
  %v547 = vsub.s32 0, %v546
  %v548 = vrot.slane %v541, %v547
  %v549 = vlaneseq
  %v550 = vshrl.u32 %v549, 7
  %v551 = vsub.s32 0, %v550
  %v552 = vrot.slane %v542, %v551
  %553 = vset.pattern.permute.xlu0 0
  %554 = vperm.xlu0 %553, %v548
  %v555 = vpop.permute.xlu0 %554
  %556 = vset.pattern.permute.xlu0 0
  %557 = vperm.xlu0 %556, %v552
  %v558 = vpop.permute.xlu0 %557
  %v561 = vcombine.low %v296, %v369
  %v562 = vcombine.low %v555, %v558
  %v564 = vsel %vm225, %v561, 0
  %v567 = vsel %vm225, %v540, 0
  %569 = vmatprep.subr.mxu0 0.0
  %570 = vmatpush1.xpose.msra.mxu0 %v567
  %571 = vmatprep.subr.mxu0 0.0
  %572 = vmatpush1.xpose.msra.mxu0 0.0
  %573 = vmatprep.subr.mxu0 0.0
  %574 = vmatpush1.xpose.msra.mxu0 0.0
  %575 = vmatprep.subr.mxu0 0.0
  %576 = vmatpush1.xpose.msra.mxu0 0.0
  %577 = vmatprep.subr.mxu0 0.0
  %578 = vmatpush1.xpose.msra.mxu0 0.0
  %579 = vmatprep.subr.mxu0 0.0
  %580 = vmatpush1.xpose.msra.mxu0 0.0
  %581 = vmatprep.subr.mxu0 0.0
  %582 = vmatpush1.xpose.msra.mxu0 0.0
  %583 = vmatprep.subr.mxu0 0.0
  %584 = vmatpush1.xpose.msra.mxu0 0.0
  %585 = vmatprep.subr.mxu0 0.0
  %586 = vmatpush1.xpose.msra.mxu0 0.0
  %587 = vmatprep.subr.mxu0 0.0
  %588 = vmatpush1.xpose.msra.mxu0 0.0
  %589 = vmatprep.subr.mxu0 0.0
  %590 = vmatpush1.xpose.msra.mxu0 0.0
  %591 = vmatprep.subr.mxu0 0.0
  %592 = vmatpush1.xpose.msra.mxu0 0.0
  %593 = vmatprep.subr.mxu0 0.0
  %594 = vmatpush1.xpose.msra.mxu0 0.0
  %595 = vmatprep.subr.mxu0 0.0
  %596 = vmatpush1.xpose.msra.mxu0 0.0
  %597 = vmatprep.subr.mxu0 0.0
  %598 = vmatpush1.xpose.msra.mxu0 0.0
  %599 = vmatprep.subr.mxu0 0.0
  %600 = vmatpush1.xpose.msra.mxu0 0.0
  %601 = vmatprep.subr.mxu0 0.0
  %602 = vmatpush1.xpose.msra.mxu0 0.0
  %603 = vmatprep.subr.mxu0 0.0
  %604 = vmatpush1.xpose.msra.mxu0 0.0
  %605 = vmatprep.subr.mxu0 0.0
  %606 = vmatpush1.xpose.msra.mxu0 0.0
  %607 = vmatprep.subr.mxu0 0.0
  %608 = vmatpush1.xpose.msra.mxu0 0.0
  %609 = vmatprep.subr.mxu0 0.0
  %610 = vmatpush1.xpose.msra.mxu0 0.0
  %611 = vmatprep.subr.mxu0 0.0
  %612 = vmatpush1.xpose.msra.mxu0 0.0
  %613 = vmatprep.subr.mxu0 0.0
  %614 = vmatpush1.xpose.msra.mxu0 0.0
  %615 = vmatprep.subr.mxu0 0.0
  %616 = vmatpush1.xpose.msra.mxu0 0.0
  %617 = vmatprep.subr.mxu0 0.0
  %618 = vmatpush1.xpose.msra.mxu0 0.0
  %619 = vmatprep.subr.mxu0 0.0
  %620 = vmatpush1.xpose.msra.mxu0 0.0
  %621 = vmatprep.subr.mxu0 0.0
  %622 = vmatpush1.xpose.msra.mxu0 0.0
  %623 = vmatprep.subr.mxu0 0.0
  %624 = vmatpush1.xpose.msra.mxu0 0.0
  %625 = vmatprep.subr.mxu0 0.0
  %626 = vmatpush1.xpose.msra.mxu0 0.0
  %627 = vmatprep.subr.mxu0 0.0
  %628 = vmatpush1.xpose.msra.mxu0 0.0
  %629 = vmatprep.subr.mxu0 0.0
  %630 = vmatpush1.xpose.msra.mxu0 0.0
  %631 = vmatprep.subr.mxu0 0.0
  %632 = vmatpush1.xpose.msra.mxu0 0.0
  %633 = vmatprep.mubr.f32.mxu0 0.0
  %634 = vmatmul.mubr.f32.gmra.mrb[0].mxu0 %v564
  %v635 = vpop.f32.mrb[0].mxu0
  %v636 = vadd.f32 %v562, %v635
  %v637 = vpop.f32.mrb[0].mxu0
  %638 = vdwg.mxu0
  %v640 = vcombine.high %v636, %v636
  %vm642 = vcmask 60416
  %643 = vst.msk [vmem:[%s11] sm:$0xf] %vm642, %v636
  %644 = vst.msk [vmem:[%s11 + $0x4] sm:$0xf] %vm642, %v640
  // Predicated region
  $region46: #{deeponet_forward.1} parent=0 // pred_check
    _
  $region47: #{deeponet_forward.1} parent=0 // pred_check_branch
    %646 = sbr.rel (0) target = $region49
  $region48: #{deeponet_forward.1} parent=0 // pred_region
    _
  $region49: #{deeponet_forward.1} parent=0 // pred_fallthru
    _
  // Predicated region
  $region50: #{deeponet_forward.1} parent=0 // pred_check
    _
  $region51: #{deeponet_forward.1} parent=0 // pred_check_branch
    %648 = sbr.rel (0) target = $region53
  $region52: #{deeponet_forward.1} parent=0 // pred_region
    _
  $region53: #{deeponet_forward.1} parent=0 // pred_fallthru
    _

</llo_original>
